<compile_context>
chip_gen: v5e
topology: v5e:2x2
jax: 0.10.0
libtpu: 0.0.40
codegen_flags: <defaults>
</compile_context>

<pallas_src>
import jax
import jax.numpy as jnp
import numpy as np
from jax.experimental import pallas as pl
from jax.experimental.pallas import tpu as pltpu

# ENV_CONFIG constants (CALCULATE_CONFIG not available; defined in-script).
HUMAN_EXHALATION_FLOW = 0.0052
TIME_STEP = 1.0


def _round_up(x, m):
    return ((x + m - 1) // m) * m


def _pinn_kernel(nodes_ref, flow_t_ref, wk_ref, src_t_ref, inc_ref,
                 res_ref, v_ref):
    # nodes_ref:  (8, Np)   row0=c, row1=people, row2=size (pad=1), row3=mask
    # flow_t_ref: (Kp, Ep)  flattened per-edge flow window (edges on lanes), row K == 1 (bias)
    # wk_ref:     (1, Kp)   flattened conv kernel, entry K == conv bias
    # src_t_ref:  (Np, Ep)  one-hot of each edge's source node (pre-transposed)
    # inc_ref:    (Ep, Np)  signed incidence (+1 at dst, -1 at src), self-loops zeroed
    # res_ref:    (1, Np)   updated concentration (lane-dense)
    # v_ref:      (1, Ep)   per-edge conv output (lane-dense)
    nodes = nodes_ref[...]
    c = nodes[0:1, :]                       # (1, Np)
    people = nodes[1:2, :]
    size = nodes[2:3, :]
    mask = nodes[3:4, :]

    # _flow_conv: Conv2d(F, 1, (1, T)) == one (1, Kp) x (Kp, Ep) MXU matmul.
    v = jnp.dot(wk_ref[...], flow_t_ref[...],
                preferred_element_type=jnp.float32)            # (1, Ep)

    # concentration at each edge's source node (gather == one-hot matmul)
    c_src = jnp.dot(c, src_t_ref[...],
                    preferred_element_type=jnp.float32)        # (1, Ep)

    # signed scatter: delta[n] = sum_e v_e * c[src_e] * (1[dst_e==n] - 1[src_e==n])
    delta = jnp.dot(v * c_src, inc_ref[...],
                    preferred_element_type=jnp.float32)        # (1, Np)

    inv_size = pl.reciprocal(size, approx=True)                # EUP slot, ~free
    exhaled = HUMAN_EXHALATION_FLOW * people * inv_size
    update = (delta * inv_size + exhaled) * jnp.float32(TIME_STEP)

    res_ref[...] = c + update * mask
    v_ref[...] = v


def pinn_layer(origin_data, flow, edge_index, params):
    """origin_data: [N, T, C>=3], flow: [E, Tf, F], edge_index: [2, E] int.

    params: conv_weight [1, F, 1, Tf] (torch Conv2d layout), conv_bias [1].
    Returns (result [N, 1], edge_out [E, 3])."""
    N = origin_data.shape[0]
    E, Tf, F = flow.shape
    K = Tf * F

    Np = _round_up(max(N, 1), 128)      # node axis -> lanes (multiple of 128)
    Ep = _round_up(max(E, 1), 128)      # edge axis -> lanes (multiple of 128)
    Kp = _round_up(K + 1, 8)            # conv contraction (+ bias row), sublane aligned

    f32 = jnp.float32

    # --- per-node stats as one tile-aligned (8, Np) slab ---------------------------
    nf = origin_data[:, -1, :3].astype(f32)                                  # (N, 3)
    nodes = jnp.zeros((8, Np), f32)
    nodes = nodes.at[0, :N].set(nf[:, 0])            # concentration
    nodes = nodes.at[1, :N].set(nf[:, 1])            # people
    nodes = nodes.at[2, :].set(1.0)                  # padded size = 1 (avoids inf recip)
    nodes = nodes.at[2, :N].set(nf[:, 2])
    nodes = nodes.at[3, :N].set(1.0)                 # mask: ones over real nodes ...
    nodes = nodes.at[3, N - 1].set(0.0)              # ... last node frozen

    # --- per-edge flow window (transposed, edges on lanes) + bias row ---------------
    flow_flat = flow.reshape(E, K).astype(f32)                               # idx = t*F + f
    flow_t = jnp.zeros((Kp, Ep), f32)
    flow_t = flow_t.at[:K, :E].set(flow_flat.T)
    flow_t = flow_t.at[K, :E].set(1.0)                                       # bias row, real edges only

    wk_tf = jnp.transpose(params["conv_weight"][0, :, 0, :]).reshape(K)      # (K,), idx = t*F + f
    wk = jnp.zeros((1, Kp), f32)
    wk = wk.at[0, :K].set(wk_tf.astype(f32))
    wk = wk.at[0, K].set(params["conv_bias"].astype(f32)[0])

    # --- structural matrices (loop-invariant, wrapper-precomputed) ------------------
    src = edge_index[0]
    dst = edge_index[1]
    ids = jnp.arange(N, dtype=edge_index.dtype)
    src_oh = (src[:, None] == ids[None, :]).astype(f32)                      # (E, N)
    dst_oh = (dst[:, None] == ids[None, :]).astype(f32)                      # (E, N)
    nonself = (src != dst).astype(f32)[:, None]                              # (E, 1)
    src_t = jnp.zeros((Np, Ep), f32).at[:N, :E].set(src_oh.T)                # (Np, Ep)
    inc = jnp.zeros((Ep, Np), f32).at[:E, :N].set((dst_oh - src_oh) * nonself)  # (Ep, Np)

    # --- one fused kernel invocation -------------------------------------------------
    res_pad, v_pad = pl.pallas_call(
        _pinn_kernel,
        out_shape=(jax.ShapeDtypeStruct((1, Np), f32),
                   jax.ShapeDtypeStruct((1, Ep), f32)),
        grid_spec=pltpu.PrefetchScalarGridSpec(
            num_scalar_prefetch=0,
            grid=(1,),
            in_specs=[
                pl.BlockSpec((8, Np), lambda i: (0, 0)),       # node stats slab
                pl.BlockSpec((Kp, Ep), lambda i: (0, 0)),      # flow window^T (+ bias row)
                pl.BlockSpec((1, Kp), lambda i: (0, 0)),       # conv kernel (+ bias)
                pl.BlockSpec((Np, Ep), lambda i: (0, 0)),      # src one-hot^T
                pl.BlockSpec((Ep, Np), lambda i: (0, 0)),      # signed incidence
            ],
            out_specs=(
                pl.BlockSpec((1, Np), lambda i: (0, 0)),
                pl.BlockSpec((1, Ep), lambda i: (0, 0)),
            ),
        ),
        compiler_params=pltpu.CompilerParams(
            dimension_semantics=("arbitrary",)),
    )(nodes, flow_t, wk, src_t, inc)

    result = res_pad[0, :N][:, None]                                          # (N, 1)
    v = v_pad[0, :E][:, None]                                                 # (E, 1)
    edge_out = jnp.concatenate([edge_index.T.astype(f32), v], axis=1)         # (E, 3)
    return result, edge_out


def pinn_layer_ref(origin_data, flow, edge_index, params):
    """Numpy reference mirroring the PyTorch per-edge loop exactly."""
    od = np.asarray(origin_data, dtype=np.float64)
    fl = np.asarray(flow, dtype=np.float64)
    ei = np.asarray(edge_index)
    N = od.shape[0]
    E = fl.shape[0]

    c = od[:, -1, 0]
    people = od[:, -1, 1]
    size = od[:, -1, 2]
    mask = np.ones(N)
    mask[-1] = 0.0

    w = np.asarray(params["conv_weight"], dtype=np.float64)[0, :, 0, :]   # (F, Tf)
    b = float(np.asarray(params["conv_bias"])[0])
    v = np.einsum("etf,ft->e", fl, w) + b                                  # (E,)

    node = np.zeros(N)
    for e in range(E):
        s, d = int(ei[0, e]), int(ei[1, e])
        if s != d:
            node[s] -= v[e] * c[s] / size[s] * TIME_STEP
            node[d] += v[e] * c[s] / size[d] * TIME_STEP

    exhaled = HUMAN_EXHALATION_FLOW * people / size
    result = c + (node + exhaled * TIME_STEP) * mask
    edge_out = np.concatenate([ei.T.astype(np.float64), v[:, None]], axis=1)
    return result[:, None], edge_out


if __name__ == "__main__":
    # Small shapes consistent with the module: N nodes, T time steps, 3 node
    # features (concentration, people, size); flow over E edges with F channels,
    # Conv2d(F, 1, (1, T)) so the post-conv flow is a scalar per edge.
    N, T, C = 8, 8, 3
    E, F = 16, 4

    key = jax.random.PRNGKey(0)
    k1, k2, k3, k4, k5, k6, k7, k8 = jax.random.split(key, 8)

    conc = jax.random.uniform(k1, (N,), minval=0.4, maxval=1.0)
    people = jnp.round(jax.random.uniform(k2, (N,), minval=0.0, maxval=4.0))
    size = jax.random.uniform(k3, (N,), minval=0.5, maxval=2.0)

    origin_data = jax.random.normal(k4, (N, T, C), dtype=jnp.float32)
    origin_data = origin_data.at[:, -1, 0].set(conc)
    origin_data = origin_data.at[:, -1, 1].set(people)
    origin_data = origin_data.at[:, -1, 2].set(size)

    flow = jax.random.normal(k5, (E, T, F), dtype=jnp.float32)

    # edges: ring over all nodes + random extras + one self-loop (exercises s != d)
    ring_src = jnp.arange(N, dtype=jnp.int32)
    ring_dst = (jnp.arange(N, dtype=jnp.int32) + 1) % N
    extra = jax.random.randint(k6, (2, E - N - 1), 0, N, dtype=jnp.int32)
    src = jnp.concatenate([ring_src, extra[0], jnp.array([3], jnp.int32)])
    dst = jnp.concatenate([ring_dst, extra[1], jnp.array([3], jnp.int32)])
    edge_index = jnp.stack([src, dst])                                  # (2, E)

    params = {
        "conv_weight": 0.2 * jax.random.normal(k7, (1, F, 1, T), dtype=jnp.float32),
        "conv_bias": 0.05 * jax.random.normal(k8, (1,), dtype=jnp.float32),
    }

    result, edge_out = pinn_layer(origin_data, flow, edge_index, params)
    result = jax.block_until_ready(result)
    edge_out = jax.block_until_ready(edge_out)
    assert result.shape == (N, 1), result.shape
    assert edge_out.shape == (E, 3), edge_out.shape

    ref_res, ref_edge = pinn_layer_ref(origin_data, flow, edge_index, params)
    np.testing.assert_allclose(np.asarray(result), ref_res, rtol=5e-3, atol=1e-2)
    np.testing.assert_allclose(np.asarray(edge_out), ref_edge, rtol=1e-4, atol=1e-4)

    print("KERNEL_OK")
</pallas_src>

<mosaic_0001>
module attributes {stable_mosaic.version = 11 : i64} {
  func.func @_pinn_kernel(%arg0: i32, %arg1: memref<8x128xf32, #tpu.memory_space<vmem>>, %arg2: memref<40x128xf32, #tpu.memory_space<vmem>>, %arg3: memref<1x40xf32, #tpu.memory_space<vmem>>, %arg4: memref<128x128xf32, #tpu.memory_space<vmem>>, %arg5: memref<128x128xf32, #tpu.memory_space<vmem>>, %arg6: memref<1x128xf32, #tpu.memory_space<vmem>>, %arg7: memref<1x128xf32, #tpu.memory_space<vmem>>) attributes {dimension_semantics = [#tpu.dimension_semantics<arbitrary>], iteration_bounds = array<i64: 1>, scalar_prefetch = 0 : i64, scratch_operands = 0 : i64, tpu.core_type = #tpu.core_type<tc>, window_params = [{pipeline_mode = #tpu.pipeline_mode<synchronous>, transform_indices = @transform_0, window_bounds = array<i64: 8, 128>}, {pipeline_mode = #tpu.pipeline_mode<synchronous>, transform_indices = @transform_1, window_bounds = array<i64: 40, 128>}, {pipeline_mode = #tpu.pipeline_mode<synchronous>, transform_indices = @transform_2, window_bounds = array<i64: 1, 40>}, {pipeline_mode = #tpu.pipeline_mode<synchronous>, transform_indices = @transform_3, window_bounds = array<i64: 128, 128>}, {pipeline_mode = #tpu.pipeline_mode<synchronous>, transform_indices = @transform_4, window_bounds = array<i64: 128, 128>}, {pipeline_mode = #tpu.pipeline_mode<synchronous>, transform_indices = @transform_5, window_bounds = array<i64: 1, 128>}, {pipeline_mode = #tpu.pipeline_mode<synchronous>, transform_indices = @transform_6, window_bounds = array<i64: 1, 128>}]} {
    %c0 = arith.constant 0 : index
    %c0_0 = arith.constant 0 : index
    %0 = vector.load %arg1[%c0, %c0_0] : memref<8x128xf32, #tpu.memory_space<vmem>>, vector<8x128xf32>
    %1 = vector.extract_strided_slice %0 {offsets = [0, 0], sizes = [1, 128], strides = [1, 1]} : vector<8x128xf32> to vector<1x128xf32>
    %2 = vector.extract_strided_slice %0 {offsets = [1, 0], sizes = [1, 128], strides = [1, 1]} : vector<8x128xf32> to vector<1x128xf32>
    %3 = vector.extract_strided_slice %0 {offsets = [2, 0], sizes = [1, 128], strides = [1, 1]} : vector<8x128xf32> to vector<1x128xf32>
    %4 = vector.extract_strided_slice %0 {offsets = [3, 0], sizes = [1, 128], strides = [1, 1]} : vector<8x128xf32> to vector<1x128xf32>
    %c0_1 = arith.constant 0 : index
    %c0_2 = arith.constant 0 : index
    %5 = vector.load %arg3[%c0_1, %c0_2] : memref<1x40xf32, #tpu.memory_space<vmem>>, vector<1x40xf32>
    %c0_3 = arith.constant 0 : index
    %c0_4 = arith.constant 0 : index
    %6 = vector.load %arg2[%c0_3, %c0_4] : memref<40x128xf32, #tpu.memory_space<vmem>>, vector<40x128xf32>
    %cst = arith.constant dense<0.000000e+00> : vector<1x128xf32>
    %7 = tpu.matmul %5, %6, %cst {dimension_numbers = #tpu.dot_dimension_numbers<[1], [0], [0], [1], [0, 0, 1, 1], [], []>} : vector<1x40xf32>, vector<40x128xf32>, vector<1x128xf32> -> vector<1x128xf32>
    %c0_5 = arith.constant 0 : index
    %c0_6 = arith.constant 0 : index
    %8 = vector.load %arg4[%c0_5, %c0_6] : memref<128x128xf32, #tpu.memory_space<vmem>>, vector<128x128xf32>
    %cst_7 = arith.constant dense<0.000000e+00> : vector<1x128xf32>
    %9 = tpu.matmul %1, %8, %cst_7 {dimension_numbers = #tpu.dot_dimension_numbers<[1], [0], [0], [1], [0, 0, 1, 1], [], []>} : vector<1x128xf32>, vector<128x128xf32>, vector<1x128xf32> -> vector<1x128xf32>
    %10 = arith.mulf %7, %9 : vector<1x128xf32>
    %c0_8 = arith.constant 0 : index
    %c0_9 = arith.constant 0 : index
    %11 = vector.load %arg5[%c0_8, %c0_9] : memref<128x128xf32, #tpu.memory_space<vmem>>, vector<128x128xf32>
    %cst_10 = arith.constant dense<0.000000e+00> : vector<1x128xf32>
    %12 = tpu.matmul %10, %11, %cst_10 {dimension_numbers = #tpu.dot_dimension_numbers<[1], [0], [0], [1], [0, 0, 1, 1], [], []>} : vector<1x128xf32>, vector<128x128xf32>, vector<1x128xf32> -> vector<1x128xf32>
    %13 = tpu.reciprocal %3 {approx = true} : vector<1x128xf32> -> vector<1x128xf32>
    %cst_11 = arith.constant 5.200000e-03 : f32
    %14 = vector.broadcast %cst_11 : f32 to vector<1x128xf32>
    %15 = arith.mulf %14, %2 : vector<1x128xf32>
    %16 = arith.mulf %15, %13 : vector<1x128xf32>
    %17 = arith.mulf %12, %13 : vector<1x128xf32>
    %18 = arith.addf %17, %16 : vector<1x128xf32>
    %cst_12 = arith.constant 1.000000e+00 : f32
    %19 = vector.broadcast %cst_12 : f32 to vector<1x128xf32>
    %20 = arith.mulf %18, %19 : vector<1x128xf32>
    %21 = arith.mulf %20, %4 : vector<1x128xf32>
    %22 = arith.addf %1, %21 : vector<1x128xf32>
    %c0_13 = arith.constant 0 : index
    %c0_14 = arith.constant 0 : index
    %23 = vector.load %arg6[%c0_13, %c0_14] : memref<1x128xf32, #tpu.memory_space<vmem>>, vector<1x128xf32>
    tpu.vector_store %arg6[%c0_13, %c0_14], %22 {strides = array<i32>} : memref<1x128xf32, #tpu.memory_space<vmem>>, vector<1x128xf32>,
    %c0_15 = arith.constant 0 : index
    %c0_16 = arith.constant 0 : index
    %24 = vector.load %arg7[%c0_15, %c0_16] : memref<1x128xf32, #tpu.memory_space<vmem>>, vector<1x128xf32>
    tpu.vector_store %arg7[%c0_15, %c0_16], %7 {strides = array<i32>} : memref<1x128xf32, #tpu.memory_space<vmem>>, vector<1x128xf32>,
    return
  }
  func.func @transform_0(%arg0: i32) -> (i32, i32) {
    %c0_i32 = arith.constant 0 : i32
    %c0_i32_0 = arith.constant 0 : i32
    %c0_i32_1 = arith.constant 0 : i32
    return %c0_i32, %c0_i32_0 : i32, i32
  }
  func.func @transform_1(%arg0: i32) -> (i32, i32) {
    %c0_i32 = arith.constant 0 : i32
    %c0_i32_0 = arith.constant 0 : i32
    %c0_i32_1 = arith.constant 0 : i32
    return %c0_i32, %c0_i32_0 : i32, i32
  }
  func.func @transform_2(%arg0: i32) -> (i32, i32) {
    %c0_i32 = arith.constant 0 : i32
    %c0_i32_0 = arith.constant 0 : i32
    %c0_i32_1 = arith.constant 0 : i32
    return %c0_i32, %c0_i32_0 : i32, i32
  }
  func.func @transform_3(%arg0: i32) -> (i32, i32) {
    %c0_i32 = arith.constant 0 : i32
    %c0_i32_0 = arith.constant 0 : i32
    %c0_i32_1 = arith.constant 0 : i32
    return %c0_i32, %c0_i32_0 : i32, i32
  }
  func.func @transform_4(%arg0: i32) -> (i32, i32) {
    %c0_i32 = arith.constant 0 : i32
    %c0_i32_0 = arith.constant 0 : i32
    %c0_i32_1 = arith.constant 0 : i32
    return %c0_i32, %c0_i32_0 : i32, i32
  }
  func.func @transform_5(%arg0: i32) -> (i32, i32) {
    %c0_i32 = arith.constant 0 : i32
    %c0_i32_0 = arith.constant 0 : i32
    %c0_i32_1 = arith.constant 0 : i32
    return %c0_i32, %c0_i32_0 : i32, i32
  }
  func.func @transform_6(%arg0: i32) -> (i32, i32) {
    %c0_i32 = arith.constant 0 : i32
    %c0_i32_0 = arith.constant 0 : i32
    %c0_i32_1 = arith.constant 0 : i32
    return %c0_i32, %c0_i32_0 : i32, i32
  }
}

</mosaic_0001>

<llo_original>
// kernel: tpu_custom_call.1
$region0: #{tpu_custom_call.1}
  #allocation0 [shape = 'u32[]', space=smem, size = 0x4, offset = 0x4, fixed_abs, tag = 'smem constant byte address 0x4 - core index']
  #allocation1 [shape = 'u32[72,128]{1,0:T(1,128)}', space=vmem, size = 0x9000, scoped, tag = 'internal scratch']
  %s0 = inlined_call_operand.hbm [shape: f32[8,128], index: 0, kind: input, shape index: {}]
  %s1 = inlined_call_operand.hbm [shape: f32[40,128], index: 1, kind: input, shape index: {}]
  %s2 = inlined_call_operand.vmem [shape: f32[1,40], index: 2, kind: input, shape index: {}]
  %s3 = inlined_call_operand.hbm [shape: f32[128,128], index: 3, kind: input, shape index: {}]
  %s4 = inlined_call_operand.hbm [shape: f32[128,128], index: 4, kind: input, shape index: {}]
  %s5 = inlined_call_operand.hbm [shape: f32[1,128], index: 5, kind: output, shape index: {0}]
  %s6 = inlined_call_operand.hbm [shape: f32[1,128], index: 6, kind: output, shape index: {1}]
  %7 = xla_tuple %s5, %s6
  %s8 = sld [smem:[#allocation0]]
  $region54: #{tpu_custom_call.1} parent=0
    _
  %s10 = ssub.s32 1, %s8
  %s11 = scalar_select 0, %s10, %s8
  $region1: #{tpu_custom_call.1} parent=0
    #allocation2 [shape = 'u8[4096]{0}', space=vmem, size = 0x1000, scoped, tag = 'input window, operand 0, single buffered']
    #allocation3 [shape = 's32[1]{0}', space=sflag, size = 0x4, scoped, tag = 'scoped memory for tpu_custom_call.1']
    #allocation4 [shape = 's32[1]{0}', space=sflag, size = 0x4, scoped, tag = 'scoped memory for tpu_custom_call.1']
    #allocation5 [shape = 'u8[20480]{0}', space=vmem, size = 0x5000, scoped, tag = 'input window, operand 1, single buffered']
    #allocation6 [shape = 's32[1]{0}', space=sflag, size = 0x4, scoped, tag = 'scoped memory for tpu_custom_call.1']
    #allocation7 [shape = 'u8[65536]{0}', space=vmem, size = 0x10000, scoped, tag = 'input window, operand 3, single buffered']
    #allocation8 [shape = 'u8[65536]{0}', space=vmem, size = 0x10000, scoped, tag = 'input window, operand 4, single buffered']
    #allocation9 [shape = 's32[1]{0}', space=sflag, size = 0x4, scoped, tag = 'scoped memory for tpu_custom_call.1']
    #allocation10 [shape = 'u8[512]{0}', space=vmem, size = 0x400, scoped, tag = 'output window, operand 0, single buffered']
    #allocation11 [shape = 'u8[512]{0}', space=vmem, size = 0x400, scoped, tag = 'output window, operand 1, single buffered']
    #allocation12 [shape = 's32[1]{0}', space=sflag, size = 0x4, scoped, tag = 'scoped memory for tpu_custom_call.1']
    %12 = vsyncpa [#allocation3], 0
    %13 = vsyncpa [#allocation6], 0
    %14 = vsyncpa [#allocation9], 0
    %15 = vsyncpa [#allocation4], 0
    %16 = vsyncpa [#allocation12], 0
    // Predicated region
    $region2: #{tpu_custom_call.1} parent=1 // pred_check
      _
    $region3: #{tpu_custom_call.1} parent=1 // pred_check_branch
      %18 = sbr.rel (0) target = $region5
    $region4: #{tpu_custom_call.1} parent=1 // pred_region
      %20 = vsyncadd [#allocation3], 0
      %s22 = sshll.u32 %s0, 4
      %s23 = int_to_ptr.hbm [resolvable:$true] %s22
      %s24 = sshll.u32 [#allocation2], 4
      %s25 = int_to_ptr.vmem [resolvable:$true] %s24
      %27 = dma.hbm_to_vmem [thread:$0]  %s23, 128, %s25, [#allocation3]
    $region5: #{tpu_custom_call.1} parent=1 // pred_fallthru
      _
    // Predicated region
    $region6: #{tpu_custom_call.1} parent=1 // pred_check
      _
    $region7: #{tpu_custom_call.1} parent=1 // pred_check_branch
      %29 = sbr.rel (0) target = $region9
    $region8: #{tpu_custom_call.1} parent=1 // pred_region
      %31 = vsyncadd [#allocation6], 0
      %s32 = sshll.u32 %s1, 4
      %s33 = int_to_ptr.hbm [resolvable:$true] %s32
      %s34 = sshll.u32 [#allocation5], 4
      %s35 = int_to_ptr.vmem [resolvable:$true] %s34
      %40 = dma.hbm_to_vmem [thread:$0]  %s33, 640, %s35, [#allocation6], 128, 128, 8
    $region9: #{tpu_custom_call.1} parent=1 // pred_fallthru
      _
    // Predicated region
    $region10: #{tpu_custom_call.1} parent=1 // pred_check
      _
    $region11: #{tpu_custom_call.1} parent=1 // pred_check_branch
      %42 = sbr.rel (0) target = $region13
    $region12: #{tpu_custom_call.1} parent=1 // pred_region
      _
    $region13: #{tpu_custom_call.1} parent=1 // pred_fallthru
      _
    // Predicated region
    $region14: #{tpu_custom_call.1} parent=1 // pred_check
      _
    $region15: #{tpu_custom_call.1} parent=1 // pred_check_branch
      %44 = sbr.rel (0) target = $region17
    $region16: #{tpu_custom_call.1} parent=1 // pred_region
      %46 = vsyncadd [#allocation6], 0
      %s47 = sshll.u32 %s3, 4
      %s48 = int_to_ptr.hbm [resolvable:$true] %s47
      %s49 = sshll.u32 [#allocation7], 4
      %s50 = int_to_ptr.vmem [resolvable:$true] %s49
      %55 = dma.hbm_to_vmem [thread:$0]  %s48, 2048, %s50, [#allocation6], 128, 128, 8
    $region17: #{tpu_custom_call.1} parent=1 // pred_fallthru
      _
    // Predicated region
    $region18: #{tpu_custom_call.1} parent=1 // pred_check
      _
    $region19: #{tpu_custom_call.1} parent=1 // pred_check_branch
      %57 = sbr.rel (0) target = $region21
    $region20: #{tpu_custom_call.1} parent=1 // pred_region
      %59 = vsyncadd [#allocation9], 0
      %s60 = sshll.u32 %s4, 4
      %s61 = int_to_ptr.hbm [resolvable:$true] %s60
      %s62 = sshll.u32 [#allocation8], 4
      %s63 = int_to_ptr.vmem [resolvable:$true] %s62
      %68 = dma.hbm_to_vmem [thread:$0]  %s61, 2048, %s63, [#allocation9], 128, 128, 8
    $region21: #{tpu_custom_call.1} parent=1 // pred_fallthru
      _
    // Predicated region
    $region22: #{tpu_custom_call.1} parent=1 // pred_check
      _
    $region23: #{tpu_custom_call.1} parent=1 // pred_check_branch
      %70 = sbr.rel (0) target = $region25
    $region24: #{tpu_custom_call.1} parent=1 // pred_region
      %72 = dma.done [#allocation3], 128
    $region25: #{tpu_custom_call.1} parent=1 // pred_fallthru
      _
    // Predicated region
    $region26: #{tpu_custom_call.1} parent=1 // pred_check
      _
    $region27: #{tpu_custom_call.1} parent=1 // pred_check_branch
      %74 = sbr.rel (0) target = $region29
    $region28: #{tpu_custom_call.1} parent=1 // pred_region
      %76 = dma.done [#allocation6], 640
    $region29: #{tpu_custom_call.1} parent=1 // pred_fallthru
      _
    // Predicated region
    $region30: #{tpu_custom_call.1} parent=1 // pred_check
      _
    $region31: #{tpu_custom_call.1} parent=1 // pred_check_branch
      %78 = sbr.rel (0) target = $region33
    $region32: #{tpu_custom_call.1} parent=1 // pred_region
      %80 = dma.done [#allocation6], 2048
    $region33: #{tpu_custom_call.1} parent=1 // pred_fallthru
      _
    // Predicated region
    $region34: #{tpu_custom_call.1} parent=1 // pred_check
      _
    $region35: #{tpu_custom_call.1} parent=1 // pred_check_branch
      %82 = sbr.rel (0) target = $region37
    $region36: #{tpu_custom_call.1} parent=1 // pred_region
      %84 = dma.done [#allocation9], 2048
    $region37: #{tpu_custom_call.1} parent=1 // pred_fallthru
      _
    %v85 = vld [vmem:[#allocation2] sm:$0xff]
    %v86 = vld [vmem:[%s2] sm:$0x1]
    %v87 = vld [vmem:[#allocation5] sm:$0xff]
    %v88 = vld [vmem:[#allocation5 + $0x8] sm:$0xff]
    %v89 = vld [vmem:[#allocation5 + $0x10] sm:$0xff]
    %v90 = vld [vmem:[#allocation5 + $0x18] sm:$0xff]
    %v91 = vld [vmem:[#allocation5 + $0x20] sm:$0xff]
    %vm92 = vcmask 326656
    %v94 = vsel %vm92, %v86, 0
    %96 = vmatpush.msra.mxu0 0.0
    %97 = vmatpush.msra.mxu0 0.0
    %98 = vmatpush.msra.mxu0 0.0
    %99 = vmatpush.msra.mxu0 0.0
    %100 = vmatpush.msra.mxu0 0.0
    %101 = vmatpush.msra.mxu0 0.0
    %102 = vmatpush.msra.mxu0 0.0
    %103 = vmatpush.msra.mxu0 0.0
    %104 = vmatpush.msra.mxu0 0.0
    %105 = vmatpush.msra.mxu0 0.0
    %106 = vmatpush.msra.mxu0 0.0
    %107 = vmatpush.msra.mxu0 %v91
    %108 = vmatpush.msra.mxu0 %v90
    %109 = vmatpush.msra.mxu0 %v89
    %110 = vmatpush.msra.mxu0 %v88
    %111 = vmatpush.msra.mxu0 %v87
    %112 = vmatmul.f32.gmra.mxu0 %v94
    %v113 = vpop.f32.mrf.mxu0
    %v114 = vadd.f32 0.0, %v113
    %115 = vdwg.mxu0
    %v116 = vld [vmem:[#allocation7] sm:$0xff]
    %v117 = vld [vmem:[#allocation7 + $0x8] sm:$0xff]
    %v118 = vld [vmem:[#allocation7 + $0x10] sm:$0xff]
    %v119 = vld [vmem:[#allocation7 + $0x18] sm:$0xff]
    %v120 = vld [vmem:[#allocation7 + $0x20] sm:$0xff]
    %v121 = vld [vmem:[#allocation7 + $0x28] sm:$0xff]
    %v122 = vld [vmem:[#allocation7 + $0x30] sm:$0xff]
    %v123 = vld [vmem:[#allocation7 + $0x38] sm:$0xff]
    %v124 = vld [vmem:[#allocation7 + $0x40] sm:$0xff]
    %v125 = vld [vmem:[#allocation7 + $0x48] sm:$0xff]
    %v126 = vld [vmem:[#allocation7 + $0x50] sm:$0xff]
    %v127 = vld [vmem:[#allocation7 + $0x58] sm:$0xff]
    %v128 = vld [vmem:[#allocation7 + $0x60] sm:$0xff]
    %v129 = vld [vmem:[#allocation7 + $0x68] sm:$0xff]
    %v130 = vld [vmem:[#allocation7 + $0x70] sm:$0xff]
    %v131 = vld [vmem:[#allocation7 + $0x78] sm:$0xff]
    %132 = vmatpush.msra.mxu0 %v131
    %133 = vmatpush.msra.mxu0 %v130
    %134 = vmatpush.msra.mxu0 %v129
    %135 = vmatpush.msra.mxu0 %v128
    %136 = vmatpush.msra.mxu0 %v127
    %137 = vmatpush.msra.mxu0 %v126
    %138 = vmatpush.msra.mxu0 %v125
    %139 = vmatpush.msra.mxu0 %v124
    %140 = vmatpush.msra.mxu0 %v123
    %141 = vmatpush.msra.mxu0 %v122
    %142 = vmatpush.msra.mxu0 %v121
    %143 = vmatpush.msra.mxu0 %v120
    %144 = vmatpush.msra.mxu0 %v119
    %145 = vmatpush.msra.mxu0 %v118
    %146 = vmatpush.msra.mxu0 %v117
    %147 = vmatpush.msra.mxu0 %v116
    %148 = vmatmul.f32.gmra.mxu0 %v85
    %v149 = vpop.f32.mrf.mxu0
    %v150 = vadd.f32 0.0, %v149
    %151 = vdwg.mxu0
    %v152 = vmul.f32 %v114, %v150
    %v153 = vld [vmem:[#allocation8] sm:$0xff]
    %v154 = vld [vmem:[#allocation8 + $0x8] sm:$0xff]
    %v155 = vld [vmem:[#allocation8 + $0x10] sm:$0xff]
    %v156 = vld [vmem:[#allocation8 + $0x18] sm:$0xff]
    %v157 = vld [vmem:[#allocation8 + $0x20] sm:$0xff]
    %v158 = vld [vmem:[#allocation8 + $0x28] sm:$0xff]
    %v159 = vld [vmem:[#allocation8 + $0x30] sm:$0xff]
    %v160 = vld [vmem:[#allocation8 + $0x38] sm:$0xff]
    %v161 = vld [vmem:[#allocation8 + $0x40] sm:$0xff]
    %v162 = vld [vmem:[#allocation8 + $0x48] sm:$0xff]
    %v163 = vld [vmem:[#allocation8 + $0x50] sm:$0xff]
    %v164 = vld [vmem:[#allocation8 + $0x58] sm:$0xff]
    %v165 = vld [vmem:[#allocation8 + $0x60] sm:$0xff]
    %v166 = vld [vmem:[#allocation8 + $0x68] sm:$0xff]
    %v167 = vld [vmem:[#allocation8 + $0x70] sm:$0xff]
    %v168 = vld [vmem:[#allocation8 + $0x78] sm:$0xff]
    %169 = vmatpush.msra.mxu0 %v168
    %170 = vmatpush.msra.mxu0 %v167
    %171 = vmatpush.msra.mxu0 %v166
    %172 = vmatpush.msra.mxu0 %v165
    %173 = vmatpush.msra.mxu0 %v164
    %174 = vmatpush.msra.mxu0 %v163
    %175 = vmatpush.msra.mxu0 %v162
    %176 = vmatpush.msra.mxu0 %v161
    %177 = vmatpush.msra.mxu0 %v160
    %178 = vmatpush.msra.mxu0 %v159
    %179 = vmatpush.msra.mxu0 %v158
    %180 = vmatpush.msra.mxu0 %v157
    %181 = vmatpush.msra.mxu0 %v156
    %182 = vmatpush.msra.mxu0 %v155
    %183 = vmatpush.msra.mxu0 %v154
    %184 = vmatpush.msra.mxu0 %v153
    %185 = vmatmul.f32.gmra.mxu0 %v152
    %v186 = vpop.f32.mrf.mxu0
    %v187 = vadd.f32 0.0, %v186
    %188 = vdwg.mxu0
    %v189 = vrcp.pop %v85
    %v190 = vmul.f32 %v85, 0.0052
    %v192 = vrot.slane %v189, 1
    %v194 = vmul.f32 %v190, %v192
    %v195 = vrot.slane %v189, 2
    %v197 = vmul.f32 %v187, %v195
    %v199 = vrot.slane %v194, 1
    %v201 = vadd.f32 %v197, %v199
    %v203 = vrot.slane %v85, 3
    %v205 = vmul.f32 %v201, %v203
    %v206 = vadd.f32 %v85, %v205
    %207 = vst [vmem:[#allocation10] sm:$0x1] %v206
    %208 = vst [vmem:[#allocation11] sm:$0x1] %v114
    // Predicated region
    $region38: #{tpu_custom_call.1} parent=1 // pred_check
      _
    $region39: #{tpu_custom_call.1} parent=1 // pred_check_branch
      %210 = sbr.rel (0) target = $region41
    $region40: #{tpu_custom_call.1} parent=1 // pred_region
      %212 = vsyncadd [#allocation4], 0
      %s214 = sshll.u32 [#allocation10], 4
      %s215 = int_to_ptr.vmem [resolvable:$true] %s214
      %s216 = sshll.u32 %s5, 4
      %s217 = int_to_ptr.hbm [resolvable:$true] %s216
      %219 = dma.vmem_to_hbm [thread:$0]  %s215, 16, %s217, [#allocation4]
    $region41: #{tpu_custom_call.1} parent=1 // pred_fallthru
      _
    // Predicated region
    $region42: #{tpu_custom_call.1} parent=1 // pred_check
      _
    $region43: #{tpu_custom_call.1} parent=1 // pred_check_branch
      %221 = sbr.rel (0) target = $region45
    $region44: #{tpu_custom_call.1} parent=1 // pred_region
      %223 = vsyncadd [#allocation12], 0
      %s225 = sshll.u32 [#allocation11], 4
      %s226 = int_to_ptr.vmem [resolvable:$true] %s225
      %s227 = sshll.u32 %s6, 4
      %s228 = int_to_ptr.hbm [resolvable:$true] %s227
      %230 = dma.vmem_to_hbm [thread:$0]  %s226, 16, %s228, [#allocation12]
    $region45: #{tpu_custom_call.1} parent=1 // pred_fallthru
      _
    // Predicated region
    $region46: #{tpu_custom_call.1} parent=1 // pred_check
      _
    $region47: #{tpu_custom_call.1} parent=1 // pred_check_branch
      %232 = sbr.rel (0) target = $region49
    $region48: #{tpu_custom_call.1} parent=1 // pred_region
      %234 = dma.done [#allocation4], 16
    $region49: #{tpu_custom_call.1} parent=1 // pred_fallthru
      _
    // Predicated region
    $region50: #{tpu_custom_call.1} parent=1 // pred_check
      _
    $region51: #{tpu_custom_call.1} parent=1 // pred_check_branch
      %236 = sbr.rel (0) target = $region53
    $region52: #{tpu_custom_call.1} parent=1 // pred_region
      %238 = dma.done [#allocation12], 16
    $region53: #{tpu_custom_call.1} parent=1 // pred_fallthru
      _
    %239 = vsyncpa [#allocation3], 1
    %240 = vsyncpa [#allocation6], 1
    %241 = vsyncpa [#allocation9], 1
    %242 = vsyncpa [#allocation4], 1
    %243 = vsyncpa [#allocation12], 1

</llo_original>
